<compile_context>
chip_gen: v5e
topology: v5e:2x2
jax: 0.10.0
libtpu: 0.0.40
codegen_flags: <defaults>
</compile_context>

<pallas_src>
import functools

import jax
import jax.numpy as jnp
from jax.experimental import pallas as pl
from jax.experimental.pallas import tpu as pltpu

LN_EPS = 1e-5
MASK_VALUE = -1e30   # finite fill: safe under KV tiling / low precision


def _layernorm(x, gamma, beta):
    mu = jnp.mean(x, axis=-1, keepdims=True)
    xc = x - mu
    var = jnp.mean(xc * xc, axis=-1, keepdims=True)
    return xc * jax.lax.rsqrt(var + LN_EPS) * gamma + beta


# --------------- kernel 1: ln1 + fused QKV projection ---------------
def ln_qkv_kernel(x_ref, g_ref, b_ref, wqkv_ref, bqkv_ref, qkv_ref):
    x = x_ref[0].astype(jnp.float32)                               # (TS, C)
    h = _layernorm(x, g_ref[...], b_ref[...])
    qkv = jnp.dot(h, wqkv_ref[...],
                  preferred_element_type=jnp.float32) + bqkv_ref[...]
    qkv_ref[0] = qkv.astype(qkv_ref.dtype)                         # (TS, 3C) lane-dense


# --------------- kernel 2: flash attention + out-proj + residual ---------------
def attn_kernel(x_ref, q_ref, k_ref, v_ref, wp_ref, bp_ref, o_ref,
                m_sc, l_sc, acc_sc, *, scale, q_tile, kv_tile, n_head):
    qi = pl.program_id(1)
    ki = pl.program_id(2)

    @pl.when(ki == 0)
    def _init():
        m_sc[...] = jnp.full_like(m_sc, MASK_VALUE)
        l_sc[...] = jnp.zeros_like(l_sc)
        acc_sc[...] = jnp.zeros_like(acc_sc)

    # Skip KV tiles entirely in the causal future of this query tile.
    @pl.when(ki * kv_tile <= qi * q_tile + q_tile - 1)
    def _compute():
        q = q_ref[0].astype(jnp.float32)                           # (H, TQ, D)
        k = k_ref[0].astype(jnp.float32)                           # (H, TK, D)
        v = v_ref[0].astype(jnp.float32)
        s = jnp.einsum("hqd,hkd->hqk", q, k,
                       preferred_element_type=jnp.float32) * scale
        row = qi * q_tile + jax.lax.broadcasted_iota(
            jnp.int32, (q_tile, kv_tile), 0)
        col = ki * kv_tile + jax.lax.broadcasted_iota(
            jnp.int32, (q_tile, kv_tile), 1)
        s = jnp.where((row >= col)[None, :, :], s, MASK_VALUE)

        m_prev = m_sc[...]
        m_new = jnp.maximum(m_prev, s.max(axis=-1, keepdims=True))
        alpha = jnp.exp(m_prev - m_new)
        p = jnp.exp(s - m_new)
        l_sc[...] = alpha * l_sc[...] + p.sum(axis=-1, keepdims=True)
        acc_sc[...] = alpha * acc_sc[...] + jnp.einsum(
            "hqk,hkd->hqd", p, v, preferred_element_type=jnp.float32)
        m_sc[...] = m_new

    @pl.when(ki == pl.num_programs(2) - 1)
    def _finalize():
        # fold softmax 1/l into the final store; approx recip -> EUP slot (free)
        y = acc_sc[...] * pl.reciprocal(l_sc[...], approx=True)    # (H, TQ, D)
        # TODO(synk): attention / residual dropout omitted (eval-mode identity).
        out = x_ref[0].astype(jnp.float32) + bp_ref[...]
        # Head outputs accumulate straight into the lane-dense (TQ, C) slab
        # (no per-head lane slicing, no concatenate).
        for h in range(n_head):
            out = out + jnp.dot(y[h], wp_ref[h],
                                preferred_element_type=jnp.float32)
        o_ref[0] = out.astype(o_ref.dtype)


# --------------- kernel 3: ln2 + MLP + residual ---------------
def ln_mlp_kernel(x_ref, g_ref, b_ref, w1_ref, b1_ref, w2_ref, b2_ref, o_ref):
    x = x_ref[0].astype(jnp.float32)                               # (TS, C)
    h = _layernorm(x, g_ref[...], b_ref[...])
    h = jnp.dot(h, w1_ref[...], preferred_element_type=jnp.float32) + b1_ref[...]
    # TODO(synk): PyTorch nn.GELU() default is exact (erf); tanh approximation used here.
    h = jax.nn.gelu(h, approximate=True)
    out = x + jnp.dot(h, w2_ref[...],
                      preferred_element_type=jnp.float32) + b2_ref[...]
    # TODO(synk): MLP dropout omitted (eval-mode identity).
    o_ref[0] = out.astype(o_ref.dtype)


def transformer_block(x, params, n_head, *, seq_tile=64, q_tile=64, kv_tile=64):
    """x: (B, T, C). params: transposed (in, out) weights, (1, out) biases."""
    B, T, C = x.shape
    assert C % n_head == 0
    D = C // n_head
    assert T % seq_tile == 0 and T % q_tile == 0 and T % kv_tile == 0

    # Fused QKV weight/bias; output-proj weight reshaped head-major (H, D, C).
    wqkv = jnp.concatenate([params["wq"], params["wk"], params["wv"]], axis=1)
    bqkv = jnp.concatenate([params["bq"], params["bk"], params["bv"]], axis=1)
    wp3 = params["wp"].reshape(n_head, D, C)

    vec_spec = pl.BlockSpec((1, C), lambda b, t: (0, 0))
    seq_spec = pl.BlockSpec((1, seq_tile, C), lambda b, t: (b, t, 0))

    # --- 1. ln1 + fused QKV projection -> (B, T, 3C) ---
    qkv = pl.pallas_call(
        ln_qkv_kernel,
        out_shape=jax.ShapeDtypeStruct((B, T, 3 * C), x.dtype),
        grid=(B, T // seq_tile),
        in_specs=[seq_spec, vec_spec, vec_spec,
                  pl.BlockSpec((C, 3 * C), lambda b, t: (0, 0)),
                  pl.BlockSpec((1, 3 * C), lambda b, t: (0, 0))],
        out_specs=pl.BlockSpec((1, seq_tile, 3 * C), lambda b, t: (b, t, 0)),
        compiler_params=pltpu.CompilerParams(
            dimension_semantics=("parallel", "parallel")),
    )(x, params["g1"], params["be1"], wqkv, bqkv)

    # Layout plumbing outside the kernel: (B, T, 3C) -> three (B, H, T, D) slabs.
    qkv = qkv.reshape(B, T, 3, n_head, D)
    q = qkv[:, :, 0].transpose(0, 2, 1, 3)
    k = qkv[:, :, 1].transpose(0, 2, 1, 3)
    v = qkv[:, :, 2].transpose(0, 2, 1, 3)

    # --- 2. flash-style causal attention + out-proj + residual ---
    kernel2 = functools.partial(attn_kernel, scale=1.0 / (D ** 0.5),
                                q_tile=q_tile, kv_tile=kv_tile, n_head=n_head)
    x_attn = pl.pallas_call(
        kernel2,
        out_shape=jax.ShapeDtypeStruct((B, T, C), x.dtype),
        grid=(B, T // q_tile, T // kv_tile),
        in_specs=[
            pl.BlockSpec((1, q_tile, C), lambda b, qi, ki: (b, qi, 0)),          # residual
            pl.BlockSpec((1, n_head, q_tile, D), lambda b, qi, ki: (b, 0, qi, 0)),
            pl.BlockSpec((1, n_head, kv_tile, D), lambda b, qi, ki: (b, 0, ki, 0)),
            pl.BlockSpec((1, n_head, kv_tile, D), lambda b, qi, ki: (b, 0, ki, 0)),
            pl.BlockSpec((n_head, D, C), lambda b, qi, ki: (0, 0, 0)),
            pl.BlockSpec((1, C), lambda b, qi, ki: (0, 0)),
        ],
        out_specs=pl.BlockSpec((1, q_tile, C), lambda b, qi, ki: (b, qi, 0)),
        scratch_shapes=[pltpu.VMEM((n_head, q_tile, 1), jnp.float32),   # running max
                        pltpu.VMEM((n_head, q_tile, 1), jnp.float32),   # running sum
                        pltpu.VMEM((n_head, q_tile, D), jnp.float32)],  # accumulator
        compiler_params=pltpu.CompilerParams(
            dimension_semantics=("parallel", "parallel", "arbitrary")),
    )(x, q, k, v, wp3, params["bp"])

    # --- 3. ln2 + MLP + residual ---
    out = pl.pallas_call(
        ln_mlp_kernel,
        out_shape=jax.ShapeDtypeStruct((B, T, C), x.dtype),
        grid=(B, T // seq_tile),
        in_specs=[seq_spec, vec_spec, vec_spec,
                  pl.BlockSpec((C, 4 * C), lambda b, t: (0, 0)),
                  pl.BlockSpec((1, 4 * C), lambda b, t: (0, 0)),
                  pl.BlockSpec((4 * C, C), lambda b, t: (0, 0)),
                  vec_spec],
        out_specs=seq_spec,
        compiler_params=pltpu.CompilerParams(
            dimension_semantics=("parallel", "parallel")),
    )(x_attn, params["g2"], params["be2"],
      params["w1"], params["b1"], params["w2"], params["b2"])
    return out


# --------------- pure-JAX reference (mirrors the PyTorch forward, eval mode) ---------------
def reference_block(x, params, n_head):
    B, T, C = x.shape
    D = C // n_head

    def ln(t, g, b):
        mu = t.mean(-1, keepdims=True)
        var = ((t - mu) ** 2).mean(-1, keepdims=True)
        return (t - mu) * jax.lax.rsqrt(var + LN_EPS) * g + b

    def lin(t, w, b):          # w already (in, out)
        return t @ w + b

    h = ln(x, params["g1"], params["be1"])
    q = lin(h, params["wq"], params["bq"]).reshape(B, T, n_head, D).transpose(0, 2, 1, 3)
    k = lin(h, params["wk"], params["bk"]).reshape(B, T, n_head, D).transpose(0, 2, 1, 3)
    v = lin(h, params["wv"], params["bv"]).reshape(B, T, n_head, D).transpose(0, 2, 1, 3)
    att = jnp.einsum("bhtd,bhsd->bhts", q, k) / (D ** 0.5)
    mask = jnp.tril(jnp.ones((T, T), dtype=bool))
    att = jnp.where(mask[None, None], att, -jnp.inf)
    att = jax.nn.softmax(att, axis=-1)
    y = jnp.einsum("bhts,bhsd->bhtd", att, v).transpose(0, 2, 1, 3).reshape(B, T, C)
    x = x + lin(y, params["wp"], params["bp"])
    h2 = ln(x, params["g2"], params["be2"])
    m = jax.nn.gelu(lin(h2, params["w1"], params["b1"]), approximate=True)
    return x + lin(m, params["w2"], params["b2"])


def init_params(key, n_embd):
    """Deterministic synthetic init matching PyTorch Linear/LayerNorm shapes."""
    keys = jax.random.split(key, 16)
    hid = 4 * n_embd

    def lin_init(kw, kb, n_in, n_out):
        bnd = 1.0 / (n_in ** 0.5)
        w = jax.random.uniform(kw, (n_out, n_in), jnp.float32, -bnd, bnd).T  # (in, out)
        b = jax.random.uniform(kb, (1, n_out), jnp.float32, -bnd, bnd)
        return w, b

    wq, bq = lin_init(keys[0], keys[1], n_embd, n_embd)
    wk, bk = lin_init(keys[2], keys[3], n_embd, n_embd)
    wv, bv = lin_init(keys[4], keys[5], n_embd, n_embd)
    wp, bp = lin_init(keys[6], keys[7], n_embd, n_embd)
    w1, b1 = lin_init(keys[8], keys[9], n_embd, hid)
    w2, b2 = lin_init(keys[10], keys[11], hid, n_embd)
    g1 = 1.0 + 0.1 * jax.random.normal(keys[12], (1, n_embd), jnp.float32)
    be1 = 0.1 * jax.random.normal(keys[13], (1, n_embd), jnp.float32)
    g2 = 1.0 + 0.1 * jax.random.normal(keys[14], (1, n_embd), jnp.float32)
    be2 = 0.1 * jax.random.normal(keys[15], (1, n_embd), jnp.float32)
    return {"wq": wq, "bq": bq, "wk": wk, "bk": bk, "wv": wv, "bv": bv,
            "wp": wp, "bp": bp, "w1": w1, "b1": b1, "w2": w2, "b2": b2,
            "g1": g1, "be1": be1, "g2": g2, "be2": be2}


if __name__ == "__main__":
    # Lane-aligned small config: block_size >= T, head_dim = 32.
    B, T, C, n_head = 2, 128, 128, 4

    key = jax.random.PRNGKey(0)
    kx, kp = jax.random.split(key)
    x = jax.random.normal(kx, (B, T, C), dtype=jnp.float32)
    params = init_params(kp, C)

    out = transformer_block(x, params, n_head)
    out = jax.block_until_ready(out)

    ref = reference_block(x, params, n_head)
    assert out.shape == (B, T, C)
    # tolerance covers the approx-reciprocal softmax normalization
    assert jnp.allclose(out, ref, atol=2e-2, rtol=2e-2), "mismatch vs reference"

    print("KERNEL_OK")
</pallas_src>

<mosaic_0001>
module attributes {stable_mosaic.version = 11 : i64} {
  func.func @ln_qkv_kernel(%arg0: i32, %arg1: i32, %arg2: memref<1x64x128xf32, #tpu.memory_space<vmem>>, %arg3: memref<1x128xf32, #tpu.memory_space<vmem>>, %arg4: memref<1x128xf32, #tpu.memory_space<vmem>>, %arg5: memref<128x384xf32, #tpu.memory_space<vmem>>, %arg6: memref<1x384xf32, #tpu.memory_space<vmem>>, %arg7: memref<1x64x384xf32, #tpu.memory_space<vmem>>) attributes {dimension_semantics = [#tpu.dimension_semantics<parallel>, #tpu.dimension_semantics<parallel>], iteration_bounds = array<i64: 2, 2>, scalar_prefetch = 0 : i64, scratch_operands = 0 : i64, tpu.core_type = #tpu.core_type<tc>, window_params = [{transform_indices = @transform_0, window_bounds = array<i64: 1, 64, 128>}, {pipeline_mode = #tpu.pipeline_mode<synchronous>, transform_indices = @transform_1, window_bounds = array<i64: 1, 128>}, {pipeline_mode = #tpu.pipeline_mode<synchronous>, transform_indices = @transform_2, window_bounds = array<i64: 1, 128>}, {pipeline_mode = #tpu.pipeline_mode<synchronous>, transform_indices = @transform_3, window_bounds = array<i64: 128, 384>}, {pipeline_mode = #tpu.pipeline_mode<synchronous>, transform_indices = @transform_4, window_bounds = array<i64: 1, 384>}, {transform_indices = @transform_5, window_bounds = array<i64: 1, 64, 384>}]} {
    %c0 = arith.constant 0 : index
    %c0_0 = arith.constant 0 : index
    %c0_1 = arith.constant 0 : index
    %0 = vector.load %arg2[%c0, %c0_0, %c0_1] : memref<1x64x128xf32, #tpu.memory_space<vmem>>, vector<1x64x128xf32>
    %1 = vector.shape_cast %0 : vector<1x64x128xf32> to vector<64x128xf32>
    %c0_2 = arith.constant 0 : index
    %c0_3 = arith.constant 0 : index
    %2 = vector.load %arg3[%c0_2, %c0_3] : memref<1x128xf32, #tpu.memory_space<vmem>>, vector<1x128xf32>
    %c0_4 = arith.constant 0 : index
    %c0_5 = arith.constant 0 : index
    %3 = vector.load %arg4[%c0_4, %c0_5] : memref<1x128xf32, #tpu.memory_space<vmem>>, vector<1x128xf32>
    %cst = arith.constant dense<0.000000e+00> : vector<64xf32>
    %4 = vector.multi_reduction <add>, %1, %cst [1] : vector<64x128xf32> to vector<64xf32>
    %5 = vector.shape_cast %4 : vector<64xf32> to vector<64x1xf32>
    %cst_6 = arith.constant 1.280000e+02 : f32
    %6 = vector.broadcast %cst_6 : f32 to vector<64x1xf32>
    %7 = arith.divf %5, %6 : vector<64x1xf32>
    %8 = vector.broadcast %7 : vector<64x1xf32> to vector<64x128xf32>
    %9 = arith.subf %1, %8 : vector<64x128xf32>
    %10 = arith.mulf %9, %9 : vector<64x128xf32>
    %cst_7 = arith.constant dense<0.000000e+00> : vector<64xf32>
    %11 = vector.multi_reduction <add>, %10, %cst_7 [1] : vector<64x128xf32> to vector<64xf32>
    %12 = vector.shape_cast %11 : vector<64xf32> to vector<64x1xf32>
    %cst_8 = arith.constant 1.280000e+02 : f32
    %13 = vector.broadcast %cst_8 : f32 to vector<64x1xf32>
    %14 = arith.divf %12, %13 : vector<64x1xf32>
    %cst_9 = arith.constant 9.99999974E-6 : f32
    %15 = vector.broadcast %cst_9 : f32 to vector<64x1xf32>
    %16 = arith.addf %14, %15 : vector<64x1xf32>
    %17 = math.rsqrt %16 : vector<64x1xf32>
    %18 = vector.broadcast %17 : vector<64x1xf32> to vector<64x128xf32>
    %19 = arith.mulf %9, %18 : vector<64x128xf32>
    %20 = vector.broadcast %2 : vector<1x128xf32> to vector<64x128xf32>
    %21 = arith.mulf %19, %20 : vector<64x128xf32>
    %22 = vector.broadcast %3 : vector<1x128xf32> to vector<64x128xf32>
    %23 = arith.addf %21, %22 : vector<64x128xf32>
    %c0_10 = arith.constant 0 : index
    %c0_11 = arith.constant 0 : index
    %24 = vector.load %arg5[%c0_10, %c0_11] : memref<128x384xf32, #tpu.memory_space<vmem>>, vector<128x384xf32>
    %cst_12 = arith.constant dense<0.000000e+00> : vector<64x384xf32>
    %25 = tpu.matmul %23, %24, %cst_12 {dimension_numbers = #tpu.dot_dimension_numbers<[1], [0], [0], [1], [0, 0, 1, 1], [], []>} : vector<64x128xf32>, vector<128x384xf32>, vector<64x384xf32> -> vector<64x384xf32>
    %c0_13 = arith.constant 0 : index
    %c0_14 = arith.constant 0 : index
    %26 = vector.load %arg6[%c0_13, %c0_14] : memref<1x384xf32, #tpu.memory_space<vmem>>, vector<1x384xf32>
    %27 = vector.broadcast %26 : vector<1x384xf32> to vector<64x384xf32>
    %28 = arith.addf %25, %27 : vector<64x384xf32>
    %c0_15 = arith.constant 0 : index
    %c0_16 = arith.constant 0 : index
    %c0_17 = arith.constant 0 : index
    %29 = vector.load %arg7[%c0_15, %c0_16, %c0_17] : memref<1x64x384xf32, #tpu.memory_space<vmem>>, vector<1x64x384xf32>
    %30 = vector.shape_cast %29 : vector<1x64x384xf32> to vector<64x384xf32>
    %31 = vector.shape_cast %28 : vector<64x384xf32> to vector<1x64x384xf32>
    tpu.vector_store %arg7[%c0_15, %c0_16, %c0_17], %31 {strides = array<i32>} : memref<1x64x384xf32, #tpu.memory_space<vmem>>, vector<1x64x384xf32>,
    return
  }
  func.func @transform_0(%arg0: i32, %arg1: i32) -> (i32, i32, i32) {
    %c0_i32 = arith.constant 0 : i32
    %c0_i32_0 = arith.constant 0 : i32
    return %arg0, %arg1, %c0_i32 : i32, i32, i32
  }
  func.func @transform_1(%arg0: i32, %arg1: i32) -> (i32, i32) {
    %c0_i32 = arith.constant 0 : i32
    %c0_i32_0 = arith.constant 0 : i32
    %c0_i32_1 = arith.constant 0 : i32
    return %c0_i32, %c0_i32_0 : i32, i32
  }
  func.func @transform_2(%arg0: i32, %arg1: i32) -> (i32, i32) {
    %c0_i32 = arith.constant 0 : i32
    %c0_i32_0 = arith.constant 0 : i32
    %c0_i32_1 = arith.constant 0 : i32
    return %c0_i32, %c0_i32_0 : i32, i32
  }
  func.func @transform_3(%arg0: i32, %arg1: i32) -> (i32, i32) {
    %c0_i32 = arith.constant 0 : i32
    %c0_i32_0 = arith.constant 0 : i32
    %c0_i32_1 = arith.constant 0 : i32
    return %c0_i32, %c0_i32_0 : i32, i32
  }
  func.func @transform_4(%arg0: i32, %arg1: i32) -> (i32, i32) {
    %c0_i32 = arith.constant 0 : i32
    %c0_i32_0 = arith.constant 0 : i32
    %c0_i32_1 = arith.constant 0 : i32
    return %c0_i32, %c0_i32_0 : i32, i32
  }
  func.func @transform_5(%arg0: i32, %arg1: i32) -> (i32, i32, i32) {
    %c0_i32 = arith.constant 0 : i32
    %c0_i32_0 = arith.constant 0 : i32
    return %arg0, %arg1, %c0_i32 : i32, i32, i32
  }
}

</mosaic_0001>

<llo_original>
// kernel: tpu_custom_call.1
$region0: #{tpu_custom_call.1}
  #allocation0 [shape = 'u32[]', space=smem, size = 0x4, offset = 0x4, fixed_abs, tag = 'smem constant byte address 0x4 - core index']
  #allocation1 [shape = 'u32[72,128]{1,0:T(1,128)}', space=vmem, size = 0x9000, scoped, tag = 'internal scratch']
  %s0 = inlined_call_operand.hbm [shape: f32[2,128,128], index: 0, kind: input, shape index: {}]
  %s1 = inlined_call_operand.hbm [shape: f32[1,128], index: 1, kind: input, shape index: {}]
  %s2 = inlined_call_operand.hbm [shape: f32[1,128], index: 2, kind: input, shape index: {}]
  %s3 = inlined_call_operand.hbm [shape: f32[128,384], index: 3, kind: input, shape index: {}]
  %s4 = inlined_call_operand.vmem [shape: f32[1,384], index: 4, kind: input, shape index: {}]
  %s5 = inlined_call_operand.hbm [shape: f32[2,128,384], index: 5, kind: output, shape index: {}]
  %s6 = sld [smem:[#allocation0]]
  $region69: #{tpu_custom_call.1} parent=0
    _
  %s8 = ssub.s32 1, %s6
  %s9 = scalar_select 0, %s8, %s6
  $region1: #{tpu_custom_call.1} parent=0
    #allocation2 [shape = 'u8[65536]{0}', space=vmem, size = 0x10000, scoped, tag = 'input window, operand 0']
    #allocation3 [shape = 's32[2]{0}', space=sflag, size = 0x8, scoped, tag = 'scoped memory for tpu_custom_call.1']
    #allocation4 [shape = 's32[2]{0}', space=sflag, size = 0x8, scoped, tag = 'scoped memory for tpu_custom_call.1']
    #allocation5 [shape = 'u8[512]{0}', space=vmem, size = 0x400, scoped, tag = 'input window, operand 1, single buffered']
    #allocation6 [shape = 's32[1]{0}', space=sflag, size = 0x4, scoped, tag = 'scoped memory for tpu_custom_call.1']
    #allocation7 [shape = 'u8[512]{0}', space=vmem, size = 0x400, scoped, tag = 'input window, operand 2, single buffered']
    #allocation8 [shape = 'u8[196608]{0}', space=vmem, size = 0x30000, scoped, tag = 'input window, operand 3, single buffered']
    #allocation9 [shape = 's32[1]{0}', space=sflag, size = 0x4, scoped, tag = 'scoped memory for tpu_custom_call.1']
    #allocation10 [shape = 'u8[196608]{0}', space=vmem, size = 0x30000, scoped, tag = 'output window, operand 0']
    %10 = vsyncpa [#allocation3], 0
    %s11 = scalar_lea.sflag [#allocation3], 1
    %12 = vsyncpa %s11, 0
    %13 = vsyncpa [#allocation6], 0
    %14 = vsyncpa [#allocation9], 0
    %15 = vsyncpa [#allocation4], 0
    %s16 = scalar_lea.sflag [#allocation4], 1
    %17 = vsyncpa %s16, 0
    loop: start=0, step=1, limit=6
    $region2: #{tpu_custom_call.1} parent=1 // loop_pre_header
      _
    $region3: #{tpu_custom_call.1} parent=1 // loop_header
      %s19 = sphi 0, %s23
      %p20 = scmp.ge.s32.totalorder %s19, 6
      %s26 = sphi 0, %s38
      %s27 = sphi 0, %s34
      %s28 = sphi 0, %s26
      %s29 = sphi 0, %s27
      %s30 = sphi 0, %s28
      %s31 = sphi 0, %s29
      %s43 = sphi 0, %s45
      %s46 = sphi 0, %s43
      %s47 = sphi 0, %s46
      %s63 = sphi 0, %s47
      %s67 = sphi 0, %s67
      %s69 = sphi 0, %s67
      %s70 = sphi 0, %s69
      %s84 = sphi 0, %s70
      %s88 = sphi 0, %s88
      %s90 = sphi 0, %s88
      %s91 = sphi 0, %s90
      %s105 = sphi 0, %s91
      %s109 = sphi 0, %s109
      %s111 = sphi 0, %s109
      %s112 = sphi 0, %s111
      %s126 = sphi 0, %s112
      %s130 = sphi 0, %s130
      %s132 = sphi 0, %s130
      %s133 = sphi 0, %s132
      %s147 = sphi 0, %s133
      %s155 = sphi 0, %s157
      %s158 = sphi 0, %s155
      %s159 = sphi 0, %s158
      %s175 = sphi 0, %s159
    $region4: #{tpu_custom_call.1} parent=1 // loop_header_branch
      %22 = sbr.rel (%p20) target = $region8
    $region5: #{tpu_custom_call.1} parent=1 // loop_body
      %s24 = ssub.s32 %s19, 1
      %s25 = ssub.s32 %s19, 2
      %s32 = sadd.s32 1, %s27
      %p33 = scmp.ge.s32.totalorder %s32, 2
      %s34 = scalar_select %p33, 0, %s32
      %s35 = sadd.s32 1, %s26
      %s36 = scalar_select %p33, %s35, %s26
      %p37 = scmp.ge.s32.totalorder %s36, 2
      %s38 = scalar_select %p37, 0, %s36
      %s39 = ssub.s32 %s26, %s38
      %s40 = ssub.s32 %s27, %s34
      %s41 = sor.u32 %s39, %s40
      %p42 = scmp.eq.s32.totalorder %s41, 0
      %s44 = sadd.s32 %s43, 1
      %s45 = scalar_select %p42, %s43, %s44
      %p48 = pneg %p42
      %p49 = scmp.eq.s32.totalorder %s19, 3
      %p50 = por %p48, %p49
      %p51 = scmp.ne.s32.totalorder %s43, %s46
      %p52 = scmp.eq.s32.totalorder %s19, 0
      %p53 = por %p51, %p52
      %p54 = scmp.ne.s32.totalorder %s43, %s46
      %p55 = scmp.eq.s32.totalorder %s24, 3
      %p56 = por %p54, %p55
      %p57 = scmp.ne.s32.totalorder %s46, %s47
      %p58 = scmp.eq.s32.totalorder %s24, 0
      %p59 = por %p57, %p58
      %p60 = scmp.ne.s32.totalorder %s46, %s47
      %p61 = scmp.eq.s32.totalorder %s25, 3
      %p62 = por %p60, %p61
      %p64 = scmp.ne.s32.totalorder %s47, %s63
      %p65 = scmp.eq.s32.totalorder %s25, 0
      %p66 = por %p64, %p65
      %s68 = sadd.s32 %s67, 1
      %p71 = scmp.eq.s32.totalorder %s19, 3
      %p72 = scmp.ne.s32.totalorder %s67, %s69
      %p73 = scmp.eq.s32.totalorder %s19, 0
      %p74 = por %p72, %p73
      %p75 = scmp.ne.s32.totalorder %s67, %s69
      %p76 = scmp.eq.s32.totalorder %s24, 3
      %p77 = por %p75, %p76
      %p78 = scmp.ne.s32.totalorder %s69, %s70
      %p79 = scmp.eq.s32.totalorder %s24, 0
      %p80 = por %p78, %p79
      %p81 = scmp.ne.s32.totalorder %s69, %s70
      %p82 = scmp.eq.s32.totalorder %s25, 3
      %p83 = por %p81, %p82
      %p85 = scmp.ne.s32.totalorder %s70, %s84
      %p86 = scmp.eq.s32.totalorder %s25, 0
      %p87 = por %p85, %p86
      %s89 = sadd.s32 %s88, 1
      %p92 = scmp.eq.s32.totalorder %s19, 3
      %p93 = scmp.ne.s32.totalorder %s88, %s90
      %p94 = scmp.eq.s32.totalorder %s19, 0
      %p95 = por %p93, %p94
      %p96 = scmp.ne.s32.totalorder %s88, %s90
      %p97 = scmp.eq.s32.totalorder %s24, 3
      %p98 = por %p96, %p97
      %p99 = scmp.ne.s32.totalorder %s90, %s91
      %p100 = scmp.eq.s32.totalorder %s24, 0
      %p101 = por %p99, %p100
      %p102 = scmp.ne.s32.totalorder %s90, %s91
      %p103 = scmp.eq.s32.totalorder %s25, 3
      %p104 = por %p102, %p103
      %p106 = scmp.ne.s32.totalorder %s91, %s105
      %p107 = scmp.eq.s32.totalorder %s25, 0
      %p108 = por %p106, %p107
      %s110 = sadd.s32 %s109, 1
      %p113 = scmp.eq.s32.totalorder %s19, 3
      %p114 = scmp.ne.s32.totalorder %s109, %s111
      %p115 = scmp.eq.s32.totalorder %s19, 0
      %p116 = por %p114, %p115
      %p117 = scmp.ne.s32.totalorder %s109, %s111
      %p118 = scmp.eq.s32.totalorder %s24, 3
      %p119 = por %p117, %p118
      %p120 = scmp.ne.s32.totalorder %s111, %s112
      %p121 = scmp.eq.s32.totalorder %s24, 0
      %p122 = por %p120, %p121
      %p123 = scmp.ne.s32.totalorder %s111, %s112
      %p124 = scmp.eq.s32.totalorder %s25, 3
      %p125 = por %p123, %p124
      %p127 = scmp.ne.s32.totalorder %s112, %s126
      %p128 = scmp.eq.s32.totalorder %s25, 0
      %p129 = por %p127, %p128
      %s131 = sadd.s32 %s130, 1
      %p134 = scmp.eq.s32.totalorder %s19, 3
      %p135 = scmp.ne.s32.totalorder %s130, %s132
      %p136 = scmp.eq.s32.totalorder %s19, 0
      %p137 = por %p135, %p136
      %p138 = scmp.ne.s32.totalorder %s130, %s132
      %p139 = scmp.eq.s32.totalorder %s24, 3
      %p140 = por %p138, %p139
      %p141 = scmp.ne.s32.totalorder %s132, %s133
      %p142 = scmp.eq.s32.totalorder %s24, 0
      %p143 = por %p141, %p142
      %p144 = scmp.ne.s32.totalorder %s132, %s133
      %p145 = scmp.eq.s32.totalorder %s25, 3
      %p146 = por %p144, %p145
      %p148 = scmp.ne.s32.totalorder %s133, %s147
      %p149 = scmp.eq.s32.totalorder %s25, 0
      %p150 = por %p148, %p149
      %s151 = ssub.s32 %s26, %s38
      %s152 = ssub.s32 %s27, %s34
      %s153 = sor.u32 %s151, %s152
      %p154 = scmp.eq.s32.totalorder %s153, 0
      %s156 = sadd.s32 %s155, 1
      %s157 = scalar_select %p154, %s155, %s156
      %p160 = pneg %p154
      %p161 = scmp.eq.s32.totalorder %s19, 3
      %p162 = por %p160, %p161
      %p163 = scmp.ne.s32.totalorder %s155, %s158
      %p164 = scmp.eq.s32.totalorder %s19, 0
      %p165 = por %p163, %p164
      %p166 = scmp.ne.s32.totalorder %s155, %s158
      %p167 = scmp.eq.s32.totalorder %s24, 3
      %p168 = por %p166, %p167
      %p169 = scmp.ne.s32.totalorder %s158, %s159
      %p170 = scmp.eq.s32.totalorder %s24, 0
      %p171 = por %p169, %p170
      %p172 = scmp.ne.s32.totalorder %s158, %s159
      %p173 = scmp.eq.s32.totalorder %s25, 3
      %p174 = por %p172, %p173
      %p176 = scmp.ne.s32.totalorder %s159, %s175
      %p177 = scmp.eq.s32.totalorder %s25, 0
      %p178 = por %p176, %p177
      %p179 = scmp.le.s32.totalorder 1, %s19
      %p180 = scmp.lt.s32.totalorder %s19, 5
      %p181 = pnand %p179, %p180
      %p182 = pneg %p181
      // Predicated region
      $region9: #{tpu_custom_call.1} parent=5 // pred_check
        _
      $region10: #{tpu_custom_call.1} parent=5 // pred_check_branch
        %184 = sbr.rel (%p181) target = $region12
      $region11: #{tpu_custom_call.1} parent=5 // pred_region
        %s185 = ssub.s32 %s19, 1
        // Predicated region
        $region13: #{tpu_custom_call.1} parent=11 // pred_check
          %p186 = pneg %p80
        $region14: #{tpu_custom_call.1} parent=11 // pred_check_branch
          %188 = sbr.rel (%p186) target = $region16
        $region15: #{tpu_custom_call.1} parent=11 // pred_region
          %190 = vsyncadd [#allocation6], 0
          %s192 = sshll.u32 %s1, 4
          %s193 = int_to_ptr.hbm [resolvable:$true] %s192
          %s194 = sshll.u32 [#allocation5], 4
          %s195 = int_to_ptr.vmem [resolvable:$true] %s194
          %197 = dma.hbm_to_vmem [thread:$0]  %s193, 16, %s195, [#allocation6]
        $region16: #{tpu_custom_call.1} parent=11 // pred_fallthru
          _
        // Predicated region
        $region17: #{tpu_custom_call.1} parent=11 // pred_check
          %p198 = pneg %p101
        $region18: #{tpu_custom_call.1} parent=11 // pred_check_branch
          %200 = sbr.rel (%p198) target = $region20
        $region19: #{tpu_custom_call.1} parent=11 // pred_region
          %202 = vsyncadd [#allocation6], 0
          %s204 = sshll.u32 %s2, 4
          %s205 = int_to_ptr.hbm [resolvable:$true] %s204
          %s206 = sshll.u32 [#allocation7], 4
          %s207 = int_to_ptr.vmem [resolvable:$true] %s206
          %209 = dma.hbm_to_vmem [thread:$0]  %s205, 16, %s207, [#allocation6]
        $region20: #{tpu_custom_call.1} parent=11 // pred_fallthru
          _
        // Predicated region
        $region21: #{tpu_custom_call.1} parent=11 // pred_check
          %p210 = pneg %p122
        $region22: #{tpu_custom_call.1} parent=11 // pred_check_branch
          %212 = sbr.rel (%p210) target = $region24
        $region23: #{tpu_custom_call.1} parent=11 // pred_region
          %214 = vsyncadd [#allocation9], 0
          %s215 = sshll.u32 %s3, 4
          %s216 = int_to_ptr.hbm [resolvable:$true] %s215
          %s217 = sshll.u32 [#allocation8], 4
          %s218 = int_to_ptr.vmem [resolvable:$true] %s217
          %223 = dma.hbm_to_vmem [thread:$0]  %s216, 6144, %s218, [#allocation9], 384, 384, 24
        $region24: #{tpu_custom_call.1} parent=11 // pred_fallthru
          _
        // Predicated region
        $region25: #{tpu_custom_call.1} parent=11 // pred_check
          %p224 = pneg %p143
        $region26: #{tpu_custom_call.1} parent=11 // pred_check_branch
          %226 = sbr.rel (%p224) target = $region28
        $region27: #{tpu_custom_call.1} parent=11 // pred_region
          _
        $region28: #{tpu_custom_call.1} parent=11 // pred_fallthru
          _
      $region12: #{tpu_custom_call.1} parent=5 // pred_fallthru
        _
      %p227 = scmp.lt.s32.totalorder %s19, 4
      // Predicated region
      $region29: #{tpu_custom_call.1} parent=5 // pred_check
        %p228 = pneg %p227
      $region30: #{tpu_custom_call.1} parent=5 // pred_check_branch
        %230 = sbr.rel (%p228) target = $region32
      $region31: #{tpu_custom_call.1} parent=5 // pred_region
        // Predicated region
        $region33: #{tpu_custom_call.1} parent=31 // pred_check
          %p231 = pneg %p53
        $region34: #{tpu_custom_call.1} parent=31 // pred_check_branch
          %233 = sbr.rel (%p231) target = $region36
        $region35: #{tpu_custom_call.1} parent=31 // pred_region
          %s234 = sand.u32 %s43, 1
          %s235 = scalar_lea.sflag [#allocation3], %s234
          %s236 = sand.u32 %s43, 1
          %s237 = smul.addr %s236, 64
          %s238 = scalar_lea.vmem [#allocation2], %s237
          %s239 = smul.u32 8, %s27
          %241 = vsyncadd %s235, 0
          %s242 = smul.addr %s26, 16
          %s243 = sadd.s32 %s239, %s242
          %s244 = smul.addr %s243, 8
          %s245 = scalar_lea.hbm %s0, %s244
          %s246 = sshll.u32 %s245, 4
          %s247 = int_to_ptr.hbm [resolvable:$true] %s246
          %s248 = sshll.u32 %s238, 4
          %s249 = int_to_ptr.vmem [resolvable:$true] %s248
          %254 = dma.hbm_to_vmem [thread:$0]  %s247, 1024, %s249, %s235, 128, 128, 8
        $region36: #{tpu_custom_call.1} parent=31 // pred_fallthru
          _
      $region32: #{tpu_custom_call.1} parent=5 // pred_fallthru
        _
      %p255 = scmp.le.s32.totalorder 1, %s19
      %p256 = scmp.lt.s32.totalorder %s19, 5
      %p257 = pnand %p255, %p256
      %p258 = pneg %p257
      // Predicated region
      $region37: #{tpu_custom_call.1} parent=5 // pred_check
        _
      $region38: #{tpu_custom_call.1} parent=5 // pred_check_branch
        %260 = sbr.rel (%p257) target = $region40
      $region39: #{tpu_custom_call.1} parent=5 // pred_region
        %s261 = ssub.s32 %s19, 1
        %s262 = sand.u32 %s46, 1
        %s263 = scalar_lea.sflag [#allocation3], %s262
        %s264 = sand.u32 %s46, 1
        %s265 = smul.addr %s264, 64
        %s266 = scalar_lea.vmem [#allocation2], %s265
        // Predicated region
        $region41: #{tpu_custom_call.1} parent=39 // pred_check
          %p267 = pneg %p59
        $region42: #{tpu_custom_call.1} parent=39 // pred_check_branch
          %269 = sbr.rel (%p267) target = $region44
        $region43: #{tpu_custom_call.1} parent=39 // pred_region
          %271 = dma.done %s263, 1024
        $region44: #{tpu_custom_call.1} parent=39 // pred_fallthru
          _
        // Predicated region
        $region45: #{tpu_custom_call.1} parent=39 // pred_check
          %p272 = pneg %p80
        $region46: #{tpu_custom_call.1} parent=39 // pred_check_branch
          %274 = sbr.rel (%p272) target = $region48
        $region47: #{tpu_custom_call.1} parent=39 // pred_region
          %276 = dma.done [#allocation6], 16
        $region48: #{tpu_custom_call.1} parent=39 // pred_fallthru
          _
        // Predicated region
        $region49: #{tpu_custom_call.1} parent=39 // pred_check
          %p277 = pneg %p101
        $region50: #{tpu_custom_call.1} parent=39 // pred_check_branch
          %279 = sbr.rel (%p277) target = $region52
        $region51: #{tpu_custom_call.1} parent=39 // pred_region
          %281 = dma.done [#allocation6], 16
        $region52: #{tpu_custom_call.1} parent=39 // pred_fallthru
          _
        // Predicated region
        $region53: #{tpu_custom_call.1} parent=39 // pred_check
          %p282 = pneg %p122
        $region54: #{tpu_custom_call.1} parent=39 // pred_check_branch
          %284 = sbr.rel (%p282) target = $region56
        $region55: #{tpu_custom_call.1} parent=39 // pred_region
          %286 = dma.done [#allocation9], 6144
        $region56: #{tpu_custom_call.1} parent=39 // pred_fallthru
          _
        %s287 = sand.u32 %s46, 1
        %s288 = scalar_lea.sflag [#allocation3], %s287
        %s289 = sand.u32 %s46, 1
        %s290 = smul.addr %s289, 64
        %s291 = scalar_lea.vmem [#allocation2], %s290
        %p292 = pneg %p59
        %p293 = pneg %p56
        %p294 = pneg %p80
        %p295 = pneg %p77
        %p296 = pneg %p101
        %p297 = pneg %p98
        %p298 = pneg %p122
        %p299 = pneg %p119
        %p300 = pneg %p143
        %p301 = pneg %p140
        %p302 = pneg %p171
        %p303 = pneg %p168
        %s304 = sand.u32 %s158, 1
        %s305 = scalar_lea.sflag [#allocation4], %s304
        %s306 = sand.u32 %s158, 1
        %s307 = smul.addr %s306, 192
        %s308 = scalar_lea.vmem [#allocation10], %s307
        %s309 = smul.u32 8, %s29
        %s310 = smul.u32 8, %s29
        %v311 = vld [vmem:[%s266] sm:$0xff]
        %v312 = vld [vmem:[%s266 + $0x8] sm:$0xff]
        %v313 = vld [vmem:[%s266 + $0x10] sm:$0xff]
        %v314 = vld [vmem:[%s266 + $0x18] sm:$0xff]
        %v315 = vld [vmem:[%s266 + $0x20] sm:$0xff]
        %v316 = vld [vmem:[%s266 + $0x28] sm:$0xff]
        %v317 = vld [vmem:[%s266 + $0x30] sm:$0xff]
        %v318 = vld [vmem:[%s266 + $0x38] sm:$0xff]
        %v319 = vld [vmem:[#allocation5] sm:$0x1]
        %v320 = vld [vmem:[#allocation7] sm:$0x1]
        %321 = vadd.xlane.f32.xlu0 %v311
        %v322 = vpop.xlane.xlu0 %321
        %323 = vadd.xlane.f32.xlu0 %v312
        %v324 = vpop.xlane.xlu0 %323
        %325 = vadd.xlane.f32.xlu0 %v313
        %v326 = vpop.xlane.xlu0 %325
        %327 = vadd.xlane.f32.xlu0 %v314
        %v328 = vpop.xlane.xlu0 %327
        %329 = vadd.xlane.f32.xlu0 %v315
        %v330 = vpop.xlane.xlu0 %329
        %331 = vadd.xlane.f32.xlu0 %v316
        %v332 = vpop.xlane.xlu0 %331
        %333 = vadd.xlane.f32.xlu0 %v317
        %v334 = vpop.xlane.xlu0 %333
        %335 = vadd.xlane.f32.xlu0 %v318
        %v336 = vpop.xlane.xlu0 %335
        %v337 = vrcp.pop 128.0
        %v338 = vmul.f32 128.0, %v337
        %v339 = vsub.f32 1.0, %v338
        %v340 = vmul.f32 %v337, %v339
        %v341 = vadd.f32 %v337, %v340
        %vm342 = vweird.f32 %v337
        %v343 = vsel %vm342, %v337, %v341
        %v344 = vmul.f32 %v322, %v343
        %v345 = vmul.f32 %v324, %v343
        %v346 = vmul.f32 %v326, %v343
        %v347 = vmul.f32 %v328, %v343
        %v348 = vmul.f32 %v330, %v343
        %v349 = vmul.f32 %v332, %v343
        %v350 = vmul.f32 %v334, %v343
        %v351 = vmul.f32 %v336, %v343
        %v352 = vsub.f32 %v311, %v344
        %v353 = vsub.f32 %v312, %v345
        %v354 = vsub.f32 %v313, %v346
        %v355 = vsub.f32 %v314, %v347
        %v356 = vsub.f32 %v315, %v348
        %v357 = vsub.f32 %v316, %v349
        %v358 = vsub.f32 %v317, %v350
        %v359 = vsub.f32 %v318, %v351
        %v360 = vmul.f32 %v352, %v352
        %v361 = vmul.f32 %v353, %v353
        %v362 = vmul.f32 %v354, %v354
        %v363 = vmul.f32 %v355, %v355
        %v364 = vmul.f32 %v356, %v356
        %v365 = vmul.f32 %v357, %v357
        %v366 = vmul.f32 %v358, %v358
        %v367 = vmul.f32 %v359, %v359
        %368 = vadd.xlane.f32.xlu0 %v360
        %v369 = vpop.xlane.xlu0 %368
        %370 = vadd.xlane.f32.xlu0 %v361
        %v371 = vpop.xlane.xlu0 %370
        %372 = vadd.xlane.f32.xlu0 %v362
        %v373 = vpop.xlane.xlu0 %372
        %374 = vadd.xlane.f32.xlu0 %v363
        %v375 = vpop.xlane.xlu0 %374
        %376 = vadd.xlane.f32.xlu0 %v364
        %v377 = vpop.xlane.xlu0 %376
        %378 = vadd.xlane.f32.xlu0 %v365
        %v379 = vpop.xlane.xlu0 %378
        %380 = vadd.xlane.f32.xlu0 %v366
        %v381 = vpop.xlane.xlu0 %380
        %382 = vadd.xlane.f32.xlu0 %v367
        %v383 = vpop.xlane.xlu0 %382
        %v384 = vmul.f32 %v369, %v343
        %v385 = vmul.f32 %v371, %v343
        %v386 = vmul.f32 %v373, %v343
        %v387 = vmul.f32 %v375, %v343
        %v388 = vmul.f32 %v377, %v343
        %v389 = vmul.f32 %v379, %v343
        %v390 = vmul.f32 %v381, %v343
        %v391 = vmul.f32 %v383, %v343
        %v392 = vadd.f32 %v384, 1e-05
        %v393 = vadd.f32 %v385, 1e-05
        %v394 = vadd.f32 %v386, 1e-05
        %v395 = vadd.f32 %v387, 1e-05
        %v396 = vadd.f32 %v388, 1e-05
        %v397 = vadd.f32 %v389, 1e-05
        %v398 = vadd.f32 %v390, 1e-05
        %v399 = vadd.f32 %v391, 1e-05
        %v400 = vrsqrt.pop %v392
        %v401 = vmul.f32 %v400, %v392
        %v402 = vmul.f32 %v401, %v400
        %v403 = vmul.f32 0.5, %v402
        %v404 = vsub.f32 1.5, %v403
        %v405 = vmul.f32 %v400, %v404
        %vm406 = vweird.f32 %v392
        %vm407 = vweird.f32 %v400
        %vm408 = vmor %vm406, %vm407
        %v409 = vsel %vm408, %v400, %v405
        %v410 = vrsqrt.pop %v393
        %v411 = vmul.f32 %v410, %v393
        %v412 = vmul.f32 %v411, %v410
        %v413 = vmul.f32 0.5, %v412
        %v414 = vsub.f32 1.5, %v413
        %v415 = vmul.f32 %v410, %v414
        %vm416 = vweird.f32 %v393
        %vm417 = vweird.f32 %v410
        %vm418 = vmor %vm416, %vm417
        %v419 = vsel %vm418, %v410, %v415
        %v420 = vrsqrt.pop %v394
        %v421 = vmul.f32 %v420, %v394
        %v422 = vmul.f32 %v421, %v420
        %v423 = vmul.f32 0.5, %v422
        %v424 = vsub.f32 1.5, %v423
        %v425 = vmul.f32 %v420, %v424
        %vm426 = vweird.f32 %v394
        %vm427 = vweird.f32 %v420
        %vm428 = vmor %vm426, %vm427
        %v429 = vsel %vm428, %v420, %v425
        %v430 = vrsqrt.pop %v395
        %v431 = vmul.f32 %v430, %v395
        %v432 = vmul.f32 %v431, %v430
        %v433 = vmul.f32 0.5, %v432
        %v434 = vsub.f32 1.5, %v433
        %v435 = vmul.f32 %v430, %v434
        %vm436 = vweird.f32 %v395
        %vm437 = vweird.f32 %v430
        %vm438 = vmor %vm436, %vm437
        %v439 = vsel %vm438, %v430, %v435
        %v440 = vrsqrt.pop %v396
        %v441 = vmul.f32 %v440, %v396
        %v442 = vmul.f32 %v441, %v440
        %v443 = vmul.f32 0.5, %v442
        %v444 = vsub.f32 1.5, %v443
        %v445 = vmul.f32 %v440, %v444
        %vm446 = vweird.f32 %v396
        %vm447 = vweird.f32 %v440
        %vm448 = vmor %vm446, %vm447
        %v449 = vsel %vm448, %v440, %v445
        %v450 = vrsqrt.pop %v397
        %v451 = vmul.f32 %v450, %v397
        %v452 = vmul.f32 %v451, %v450
        %v453 = vmul.f32 0.5, %v452
        %v454 = vsub.f32 1.5, %v453
        %v455 = vmul.f32 %v450, %v454
        %vm456 = vweird.f32 %v397
        %vm457 = vweird.f32 %v450
        %vm458 = vmor %vm456, %vm457
        %v459 = vsel %vm458, %v450, %v455
        %v460 = vrsqrt.pop %v398
        %v461 = vmul.f32 %v460, %v398
        %v462 = vmul.f32 %v461, %v460
        %v463 = vmul.f32 0.5, %v462
        %v464 = vsub.f32 1.5, %v463
        %v465 = vmul.f32 %v460, %v464
        %vm466 = vweird.f32 %v398
        %vm467 = vweird.f32 %v460
        %vm468 = vmor %vm466, %vm467
        %v469 = vsel %vm468, %v460, %v465
        %v470 = vrsqrt.pop %v399
        %v471 = vmul.f32 %v470, %v399
        %v472 = vmul.f32 %v471, %v470
        %v473 = vmul.f32 0.5, %v472
        %v474 = vsub.f32 1.5, %v473
        %v475 = vmul.f32 %v470, %v474
        %vm476 = vweird.f32 %v399
        %vm477 = vweird.f32 %v470
        %vm478 = vmor %vm476, %vm477
        %v479 = vsel %vm478, %v470, %v475
        %v480 = vmul.f32 %v352, %v409
        %v481 = vmul.f32 %v353, %v419
        %v482 = vmul.f32 %v354, %v429
        %v483 = vmul.f32 %v355, %v439
        %v484 = vmul.f32 %v356, %v449
        %v485 = vmul.f32 %v357, %v459
        %v486 = vmul.f32 %v358, %v469
        %v487 = vmul.f32 %v359, %v479
        %v489 = vperm.slane %v319, 0
        %v491 = vmul.f32 %v480, %v489
        %v492 = vmul.f32 %v481, %v489
        %v493 = vmul.f32 %v482, %v489
        %v494 = vmul.f32 %v483, %v489
        %v495 = vmul.f32 %v484, %v489
        %v496 = vmul.f32 %v485, %v489
        %v497 = vmul.f32 %v486, %v489
        %v498 = vmul.f32 %v487, %v489
        %v500 = vperm.slane %v320, 0
        %v502 = vadd.f32 %v491, %v500
        %v503 = vadd.f32 %v492, %v500
        %v504 = vadd.f32 %v493, %v500
        %v505 = vadd.f32 %v494, %v500
        %v506 = vadd.f32 %v495, %v500
        %v507 = vadd.f32 %v496, %v500
        %v508 = vadd.f32 %v497, %v500
        %v509 = vadd.f32 %v498, %v500
        %v510 = vld [vmem:[#allocation8] sm:$0xff]
        %v511 = vld [vmem:[#allocation8 + $0x8] sm:$0xff]
        %v512 = vld [vmem:[#allocation8 + $0x10] sm:$0xff]
        %v513 = vld [vmem:[#allocation8 + $0x18] sm:$0xff]
        %v514 = vld [vmem:[#allocation8 + $0x20] sm:$0xff]
        %v515 = vld [vmem:[#allocation8 + $0x28] sm:$0xff]
        %v516 = vld [vmem:[#allocation8 + $0x30] sm:$0xff]
        %v517 = vld [vmem:[#allocation8 + $0x38] sm:$0xff]
        %v518 = vld [vmem:[#allocation8 + $0x40] sm:$0xff]
        %v519 = vld [vmem:[#allocation8 + $0x48] sm:$0xff]
        %v520 = vld [vmem:[#allocation8 + $0x50] sm:$0xff]
        %v521 = vld [vmem:[#allocation8 + $0x58] sm:$0xff]
        %v522 = vld [vmem:[#allocation8 + $0x60] sm:$0xff]
        %v523 = vld [vmem:[#allocation8 + $0x68] sm:$0xff]
        %v524 = vld [vmem:[#allocation8 + $0x70] sm:$0xff]
        %v525 = vld [vmem:[#allocation8 + $0x78] sm:$0xff]
        %v526 = vld [vmem:[#allocation8 + $0x80] sm:$0xff]
        %v527 = vld [vmem:[#allocation8 + $0x88] sm:$0xff]
        %v528 = vld [vmem:[#allocation8 + $0x90] sm:$0xff]
        %v529 = vld [vmem:[#allocation8 + $0x98] sm:$0xff]
        %v530 = vld [vmem:[#allocation8 + $0xa0] sm:$0xff]
        %v531 = vld [vmem:[#allocation8 + $0xa8] sm:$0xff]
        %v532 = vld [vmem:[#allocation8 + $0xb0] sm:$0xff]
        %v533 = vld [vmem:[#allocation8 + $0xb8] sm:$0xff]
        %v534 = vld [vmem:[#allocation8 + $0xc0] sm:$0xff]
        %v535 = vld [vmem:[#allocation8 + $0xc8] sm:$0xff]
        %v536 = vld [vmem:[#allocation8 + $0xd0] sm:$0xff]
        %v537 = vld [vmem:[#allocation8 + $0xd8] sm:$0xff]
        %v538 = vld [vmem:[#allocation8 + $0xe0] sm:$0xff]
        %v539 = vld [vmem:[#allocation8 + $0xe8] sm:$0xff]
        %v540 = vld [vmem:[#allocation8 + $0xf0] sm:$0xff]
        %v541 = vld [vmem:[#allocation8 + $0xf8] sm:$0xff]
        %v542 = vld [vmem:[#allocation8 + $0x100] sm:$0xff]
        %v543 = vld [vmem:[#allocation8 + $0x108] sm:$0xff]
        %v544 = vld [vmem:[#allocation8 + $0x110] sm:$0xff]
        %v545 = vld [vmem:[#allocation8 + $0x118] sm:$0xff]
        %v546 = vld [vmem:[#allocation8 + $0x120] sm:$0xff]
        %v547 = vld [vmem:[#allocation8 + $0x128] sm:$0xff]
        %v548 = vld [vmem:[#allocation8 + $0x130] sm:$0xff]
        %v549 = vld [vmem:[#allocation8 + $0x138] sm:$0xff]
        %v550 = vld [vmem:[#allocation8 + $0x140] sm:$0xff]
        %v551 = vld [vmem:[#allocation8 + $0x148] sm:$0xff]
        %v552 = vld [vmem:[#allocation8 + $0x150] sm:$0xff]
        %v553 = vld [vmem:[#allocation8 + $0x158] sm:$0xff]
        %v554 = vld [vmem:[#allocation8 + $0x160] sm:$0xff]
        %v555 = vld [vmem:[#allocation8 + $0x168] sm:$0xff]
        %v556 = vld [vmem:[#allocation8 + $0x170] sm:$0xff]
        %v557 = vld [vmem:[#allocation8 + $0x178] sm:$0xff]
        %v558 = vld [vmem:[%s4] sm:$0x7]
        %v560 = vperm.slane %v558, 0
        %v561 = vperm.slane %v558, 1
        %v562 = vperm.slane %v558, 2
        %566 = vmatpush.msra.mxu0 %v555
        %567 = vmatpush.msra.mxu0 %v552
        %568 = vmatpush.msra.mxu0 %v549
        %569 = vmatpush.msra.mxu0 %v546
        %570 = vmatpush.msra.mxu0 %v543
        %571 = vmatpush.msra.mxu0 %v540
        %572 = vmatpush.msra.mxu0 %v537
        %573 = vmatpush.msra.mxu0 %v534
        %574 = vmatpush.msra.mxu0 %v531
        %575 = vmatpush.msra.mxu0 %v528
        %576 = vmatpush.msra.mxu0 %v525
        %577 = vmatpush.msra.mxu0 %v522
        %578 = vmatpush.msra.mxu0 %v519
        %579 = vmatpush.msra.mxu0 %v516
        %580 = vmatpush.msra.mxu0 %v513
        %581 = vmatpush.msra.mxu0 %v510
        %582 = vmatmul.f32.gmra.mxu0 %v502
        %v583 = vpop.f32.mrf.mxu0
        %v584 = vadd.f32 %v560, %v583
        %585 = vmatmul.f32.gmra.mxu0 %v503
        %v586 = vpop.f32.mrf.mxu0
        %v587 = vadd.f32 %v560, %v586
        %588 = vmatmul.f32.gmra.mxu0 %v504
        %v589 = vpop.f32.mrf.mxu0
        %v590 = vadd.f32 %v560, %v589
        %591 = vmatmul.f32.gmra.mxu0 %v505
        %v592 = vpop.f32.mrf.mxu0
        %v593 = vadd.f32 %v560, %v592
        %594 = vmatmul.f32.gmra.mxu0 %v506
        %v595 = vpop.f32.mrf.mxu0
        %v596 = vadd.f32 %v560, %v595
        %597 = vmatmul.f32.gmra.mxu0 %v507
        %v598 = vpop.f32.mrf.mxu0
        %v599 = vadd.f32 %v560, %v598
        %600 = vmatmul.f32.gmra.mxu0 %v508
        %v601 = vpop.f32.mrf.mxu0
        %v602 = vadd.f32 %v560, %v601
        %603 = vmatmul.f32.gmra.mxu0 %v509
        %v604 = vpop.f32.mrf.mxu0
        %v605 = vadd.f32 %v560, %v604
        %606 = vdwg.mxu0
        %607 = vmatpush.msra.mxu0 %v556
        %608 = vmatpush.msra.mxu0 %v553
        %609 = vmatpush.msra.mxu0 %v550
        %610 = vmatpush.msra.mxu0 %v547
        %611 = vmatpush.msra.mxu0 %v544
        %612 = vmatpush.msra.mxu0 %v541
        %613 = vmatpush.msra.mxu0 %v538
        %614 = vmatpush.msra.mxu0 %v535
        %615 = vmatpush.msra.mxu0 %v532
        %616 = vmatpush.msra.mxu0 %v529
        %617 = vmatpush.msra.mxu0 %v526
        %618 = vmatpush.msra.mxu0 %v523
        %619 = vmatpush.msra.mxu0 %v520
        %620 = vmatpush.msra.mxu0 %v517
        %621 = vmatpush.msra.mxu0 %v514
        %622 = vmatpush.msra.mxu0 %v511
        %623 = vmatmul.f32.gmra.mxu0 %v502
        %v624 = vpop.f32.mrf.mxu0
        %v625 = vadd.f32 %v561, %v624
        %626 = vmatmul.f32.gmra.mxu0 %v503
        %v627 = vpop.f32.mrf.mxu0
        %v628 = vadd.f32 %v561, %v627
        %629 = vmatmul.f32.gmra.mxu0 %v504
        %v630 = vpop.f32.mrf.mxu0
        %v631 = vadd.f32 %v561, %v630
        %632 = vmatmul.f32.gmra.mxu0 %v505
        %v633 = vpop.f32.mrf.mxu0
        %v634 = vadd.f32 %v561, %v633
        %635 = vmatmul.f32.gmra.mxu0 %v506
        %v636 = vpop.f32.mrf.mxu0
        %v637 = vadd.f32 %v561, %v636
        %638 = vmatmul.f32.gmra.mxu0 %v507
        %v639 = vpop.f32.mrf.mxu0
        %v640 = vadd.f32 %v561, %v639
        %641 = vmatmul.f32.gmra.mxu0 %v508
        %v642 = vpop.f32.mrf.mxu0
        %v643 = vadd.f32 %v561, %v642
        %644 = vmatmul.f32.gmra.mxu0 %v509
        %v645 = vpop.f32.mrf.mxu0
        %v646 = vadd.f32 %v561, %v645
        %647 = vdwg.mxu0
        %648 = vmatpush.msra.mxu0 %v557
        %649 = vmatpush.msra.mxu0 %v554
        %650 = vmatpush.msra.mxu0 %v551
        %651 = vmatpush.msra.mxu0 %v548
        %652 = vmatpush.msra.mxu0 %v545
        %653 = vmatpush.msra.mxu0 %v542
        %654 = vmatpush.msra.mxu0 %v539
        %655 = vmatpush.msra.mxu0 %v536
        %656 = vmatpush.msra.mxu0 %v533
        %657 = vmatpush.msra.mxu0 %v530
        %658 = vmatpush.msra.mxu0 %v527
        %659 = vmatpush.msra.mxu0 %v524
        %660 = vmatpush.msra.mxu0 %v521
        %661 = vmatpush.msra.mxu0 %v518
        %662 = vmatpush.msra.mxu0 %v515
        %663 = vmatpush.msra.mxu0 %v512
        %664 = vmatmul.f32.gmra.mxu0 %v502
        %v665 = vpop.f32.mrf.mxu0
        %v666 = vadd.f32 %v562, %v665
        %667 = vmatmul.f32.gmra.mxu0 %v503
        %v668 = vpop.f32.mrf.mxu0
        %v669 = vadd.f32 %v562, %v668
        %670 = vmatmul.f32.gmra.mxu0 %v504
        %v671 = vpop.f32.mrf.mxu0
        %v672 = vadd.f32 %v562, %v671
        %673 = vmatmul.f32.gmra.mxu0 %v505
        %v674 = vpop.f32.mrf.mxu0
        %v675 = vadd.f32 %v562, %v674
        %676 = vmatmul.f32.gmra.mxu0 %v506
        %v677 = vpop.f32.mrf.mxu0
        %v678 = vadd.f32 %v562, %v677
        %679 = vmatmul.f32.gmra.mxu0 %v507
        %v680 = vpop.f32.mrf.mxu0
        %v681 = vadd.f32 %v562, %v680
        %682 = vmatmul.f32.gmra.mxu0 %v508
        %v683 = vpop.f32.mrf.mxu0
        %v684 = vadd.f32 %v562, %v683
        %685 = vmatmul.f32.gmra.mxu0 %v509
        %v686 = vpop.f32.mrf.mxu0
        %v687 = vadd.f32 %v562, %v686
        %688 = vdwg.mxu0
        %689 = vst [vmem:[%s308] sm:$0xff] %v584
        %690 = vst [vmem:[%s308 + $0x8] sm:$0xff] %v625
        %691 = vst [vmem:[%s308 + $0x10] sm:$0xff] %v666
        %692 = vst [vmem:[%s308 + $0x18] sm:$0xff] %v587
        %693 = vst [vmem:[%s308 + $0x20] sm:$0xff] %v628
        %694 = vst [vmem:[%s308 + $0x28] sm:$0xff] %v669
        %695 = vst [vmem:[%s308 + $0x30] sm:$0xff] %v590
        %696 = vst [vmem:[%s308 + $0x38] sm:$0xff] %v631
        %697 = vst [vmem:[%s308 + $0x40] sm:$0xff] %v672
        %698 = vst [vmem:[%s308 + $0x48] sm:$0xff] %v593
        %699 = vst [vmem:[%s308 + $0x50] sm:$0xff] %v634
        %700 = vst [vmem:[%s308 + $0x58] sm:$0xff] %v675
        %701 = vst [vmem:[%s308 + $0x60] sm:$0xff] %v596
        %702 = vst [vmem:[%s308 + $0x68] sm:$0xff] %v637
        %703 = vst [vmem:[%s308 + $0x70] sm:$0xff] %v678
        %704 = vst [vmem:[%s308 + $0x78] sm:$0xff] %v599
        %705 = vst [vmem:[%s308 + $0x80] sm:$0xff] %v640
        %706 = vst [vmem:[%s308 + $0x88] sm:$0xff] %v681
        %707 = vst [vmem:[%s308 + $0x90] sm:$0xff] %v602
        %708 = vst [vmem:[%s308 + $0x98] sm:$0xff] %v643
        %709 = vst [vmem:[%s308 + $0xa0] sm:$0xff] %v684
        %710 = vst [vmem:[%s308 + $0xa8] sm:$0xff] %v605
        %711 = vst [vmem:[%s308 + $0xb0] sm:$0xff] %v646
        %712 = vst [vmem:[%s308 + $0xb8] sm:$0xff] %v687
        %s713 = sand.u32 %s158, 1
        %s714 = scalar_lea.sflag [#allocation4], %s713
        %s715 = sand.u32 %s158, 1
        %s716 = smul.addr %s715, 192
        %s717 = scalar_lea.vmem [#allocation10], %s716
        // Predicated region
        $region57: #{tpu_custom_call.1} parent=39 // pred_check
          %p718 = pneg %p168
        $region58: #{tpu_custom_call.1} parent=39 // pred_check_branch
          %720 = sbr.rel (%p718) target = $region60
        $region59: #{tpu_custom_call.1} parent=39 // pred_region
          %s721 = smul.u32 8, %s29
          %723 = vsyncadd %s714, 0
          %s724 = smul.addr %s721, 3
          %s725 = smul.addr %s28, 48
          %s726 = sadd.s32 %s724, %s725
          %s727 = smul.addr %s726, 8
          %s728 = scalar_lea.hbm %s5, %s727
          %s729 = sshll.u32 %s717, 4
          %s730 = int_to_ptr.vmem [resolvable:$true] %s729
          %s731 = sshll.u32 %s728, 4
          %s732 = int_to_ptr.hbm [resolvable:$true] %s731
          %737 = dma.vmem_to_hbm [thread:$0]  %s730, 3072, %s732, %s714, 384, 384, 24
        $region60: #{tpu_custom_call.1} parent=39 // pred_fallthru
          _
      $region40: #{tpu_custom_call.1} parent=5 // pred_fallthru
        _
      %p738 = scmp.le.s32.totalorder 2, %s19
      // Predicated region
      $region61: #{tpu_custom_call.1} parent=5 // pred_check
        %p739 = pneg %p738
      $region62: #{tpu_custom_call.1} parent=5 // pred_check_branch
        %741 = sbr.rel (%p739) target = $region64
      $region63: #{tpu_custom_call.1} parent=5 // pred_region
        %s742 = ssub.s32 %s19, 2
        // Predicated region
        $region65: #{tpu_custom_call.1} parent=63 // pred_check
          %p743 = pneg %p174
        $region66: #{tpu_custom_call.1} parent=63 // pred_check_branch
          %745 = sbr.rel (%p743) target = $region68
        $region67: #{tpu_custom_call.1} parent=63 // pred_region
          %s746 = sand.u32 %s159, 1
          %s747 = scalar_lea.sflag [#allocation4], %s746
          %s748 = sand.u32 %s159, 1
          %s749 = smul.addr %s748, 192
          %s750 = scalar_lea.vmem [#allocation10], %s749
          %752 = dma.done %s747, 3072
        $region68: #{tpu_custom_call.1} parent=63 // pred_fallthru
          _
      $region64: #{tpu_custom_call.1} parent=5 // pred_fallthru
        _
    $region6: #{tpu_custom_call.1} parent=1 // loop_footer
      %s23 = sadd.s32 1, %s19
    $region7: #{tpu_custom_call.1} parent=1 // loop_footer_branch
      %18 = sbr.rel target = $region3
    $region8: #{tpu_custom_call.1} parent=1 // loop_exit
      _
    %753 = vsyncpa [#allocation3], 1
    %s754 = scalar_lea.sflag [#allocation3], 1
    %755 = vsyncpa %s754, 1
    %756 = vsyncpa [#allocation6], 1
    %757 = vsyncpa [#allocation9], 1
    %758 = vsyncpa [#allocation4], 1
    %s759 = scalar_lea.sflag [#allocation4], 1
    %760 = vsyncpa %s759, 1

</llo_original>
